<compile_context>
chip_gen: v6e
topology: v6e:2x2x1
jax: 0.10.0
libtpu: 0.0.40
codegen_flags: <defaults>
</compile_context>

<pallas_src>
import functools

import jax
import jax.numpy as jnp
from jax import lax
from jax.experimental import pallas as pl
from jax.experimental.pallas import tpu as pltpu

REWARD_LANES = 128  # lane-dense reward slab width


def _round_up(x, m):
    return (x + m - 1) // m * m


# ----------------------------------------------------------------------------
# Pallas kernel: RLE features + intrinsic reward + fused RMS batch statistics.
# ----------------------------------------------------------------------------
def _rle_kernel(b_total, tb,
                obs_ref, goals_ref,
                w1_ref, b1_ref, w2_ref, b2_ref, w3_ref, b3_ref, w4_ref, b4_ref,
                mean_ref, inv_std_ref,
                reward_ref, raw_ref, feat_ref, fsum_ref, fss_ref):
    x = obs_ref[...].astype(jnp.float32)

    # rle_net: 3 x (Linear -> ReLU), weights stored [in, out].
    h = jnp.dot(x, w1_ref[...], preferred_element_type=jnp.float32) + b1_ref[...]
    h = jnp.maximum(h, 0.0)
    h = jnp.dot(h, w2_ref[...], preferred_element_type=jnp.float32) + b2_ref[...]
    h = jnp.maximum(h, 0.0)
    h = jnp.dot(h, w3_ref[...], preferred_element_type=jnp.float32) + b3_ref[...]
    h = jnp.maximum(h, 0.0)

    # last_layer: Linear(64, feature_size)
    raw = jnp.dot(h, w4_ref[...], preferred_element_type=jnp.float32) + b4_ref[...]

    # running-mean-std normalisation (reciprocal hoisted to a kernel input)
    feat = (raw - mean_ref[...]) * inv_std_ref[...]

    raw_ref[...] = raw
    feat_ref[...] = feat

    # reward = <feat, goal> / ||feat||   via rsqrt on the EUP slot (+eps: no NaN)
    num = jnp.sum(feat * goals_ref[...], axis=1, keepdims=True)
    den = jnp.sum(feat * feat, axis=1, keepdims=True)
    reward = num * lax.rsqrt(den + 1e-12)
    reward_ref[...] = jnp.broadcast_to(reward, (tb, REWARD_LANES))

    # fused RunningMeanStd batch statistics (mask out padded tail rows)
    row = pl.program_id(0) * tb + lax.broadcasted_iota(jnp.int32, (tb, 1), 0)
    valid = (row < b_total).astype(jnp.float32)
    fm = feat * valid
    fsum_ref[...] = jnp.sum(fm, axis=0, keepdims=True)[None]       # (1,1,F)
    fss_ref[...] = jnp.sum(fm * fm, axis=0, keepdims=True)[None]   # (1,1,F)


def compute_rle_feat(obs, goals, params, mean, std, *, tb=256):
    """Fused RLE feature / intrinsic-reward / RMS-batch-stats kernel.

    obs:   [B, input_size]  f32
    goals: [B, feature_size] f32 (row-normalised)
    Returns:
        reward [B], raw_feat [B,F], feat [B,F],
        (batch_mean [1,F], batch_var [1,F], batch_count)  -- for update_rms.
    """
    B, in_dim = obs.shape
    hid = params["w1"].shape[1]
    F = params["w4"].shape[1]

    TB = min(tb, _round_up(B, 8))
    Bp = _round_up(B, TB)
    if Bp != B:
        pad = Bp - B
        obs = jnp.pad(obs, ((0, pad), (0, 0)))
        goals = jnp.pad(goals, ((0, pad), (0, 0)))
    num_tiles = Bp // TB

    inv_std = 1.0 / (std + 1e-5)  # hoisted reciprocal, [1, F]

    batch_map = lambda i: (i, 0)
    resident = lambda i: (0, 0)

    grid_spec = pltpu.PrefetchScalarGridSpec(
        num_scalar_prefetch=0,
        grid=(num_tiles,),
        in_specs=[
            pl.BlockSpec((TB, in_dim), batch_map),   # obs
            pl.BlockSpec((TB, F), batch_map),        # goals
            pl.BlockSpec((in_dim, hid), resident),   # w1
            pl.BlockSpec((1, hid), resident),        # b1
            pl.BlockSpec((hid, hid), resident),      # w2
            pl.BlockSpec((1, hid), resident),        # b2
            pl.BlockSpec((hid, hid), resident),      # w3
            pl.BlockSpec((1, hid), resident),        # b3
            pl.BlockSpec((hid, F), resident),        # w4
            pl.BlockSpec((1, F), resident),          # b4
            pl.BlockSpec((1, F), resident),          # mean
            pl.BlockSpec((1, F), resident),          # inv_std
        ],
        out_specs=(
            pl.BlockSpec((TB, REWARD_LANES), batch_map),    # reward (lane-dense)
            pl.BlockSpec((TB, F), batch_map),               # raw feat
            pl.BlockSpec((TB, F), batch_map),               # normalised feat
            pl.BlockSpec((1, 1, F), lambda i: (i, 0, 0)),   # per-tile sum
            pl.BlockSpec((1, 1, F), lambda i: (i, 0, 0)),   # per-tile sum-of-sq
        ),
    )

    reward_wide, raw, feat, fsum, fss = pl.pallas_call(
        functools.partial(_rle_kernel, B, TB),
        grid_spec=grid_spec,
        out_shape=(
            jax.ShapeDtypeStruct((Bp, REWARD_LANES), jnp.float32),
            jax.ShapeDtypeStruct((Bp, F), jnp.float32),
            jax.ShapeDtypeStruct((Bp, F), jnp.float32),
            jax.ShapeDtypeStruct((num_tiles, 1, F), jnp.float32),
            jax.ShapeDtypeStruct((num_tiles, 1, F), jnp.float32),
        ),
        compiler_params=pltpu.CompilerParams(
            dimension_semantics=("parallel",)),
    )(obs, goals,
      params["w1"], params["b1"], params["w2"], params["b2"],
      params["w3"], params["b3"], params["w4"], params["b4"],
      mean, inv_std)

    reward = reward_wide[:B, 0]
    raw = raw[:B]
    feat = feat[:B]
    # Tiny [tiles,1,F] partial sums -> batch mean/var for RunningMeanStd.update
    batch_mean = jnp.sum(fsum, axis=0) / B                   # [1, F]
    batch_var = jnp.sum(fss, axis=0) / B - batch_mean * batch_mean
    return reward, raw, feat, (batch_mean, batch_var, B)


# ----------------------------------------------------------------------------
# Deterministic parameter construction (mirrors RLEModel.__init__ / layer_init)
# ----------------------------------------------------------------------------
def orthogonal_init(key, shape, gain):
    rows, cols = shape
    n = max(rows, cols)
    a = jax.random.normal(key, (n, n), dtype=jnp.float32)
    q, r = jnp.linalg.qr(a)
    q = q * jnp.sign(jnp.diag(r))[None, :]
    return gain * q[:rows, :cols]


def make_params(key, input_size, hidden, feature_size):
    ks = jax.random.split(key, 4)
    g = jnp.sqrt(2.0)
    # weights stored [in, out] (transposed vs torch's [out, in])
    return {
        "w1": orthogonal_init(ks[0], (input_size, hidden), g),
        "b1": jnp.zeros((1, hidden), jnp.float32),
        "w2": orthogonal_init(ks[1], (hidden, hidden), g),
        "b2": jnp.zeros((1, hidden), jnp.float32),
        "w3": orthogonal_init(ks[2], (hidden, hidden), g),
        "b3": jnp.zeros((1, hidden), jnp.float32),
        # TODO(synk): z_layer_init is user-supplied; same orthogonal scheme used.
        "w4": orthogonal_init(ks[3], (hidden, feature_size), g),
        "b4": jnp.zeros((1, feature_size), jnp.float32),
    }


if __name__ == "__main__":
    INPUT_SIZE = 16   # prod(observation_space.shape) for the grid world
    HIDDEN = 64
    FEATURE_SIZE = 8

    key = jax.random.PRNGKey(0)
    k_par, k_c1, k_c2 = jax.random.split(key, 3)

    params = make_params(k_par, INPUT_SIZE, HIDDEN, FEATURE_SIZE)

    # RunningMeanStd initial state: mean=0, var=1 -> std=1
    rle_feat_mean = jnp.zeros((1, FEATURE_SIZE), jnp.float32)
    rle_feat_std = jnp.ones((1, FEATURE_SIZE), jnp.float32)

    def reference(obs, goals):
        h = jnp.maximum(obs @ params["w1"] + params["b1"], 0.0)
        h = jnp.maximum(h @ params["w2"] + params["b2"], 0.0)
        h = jnp.maximum(h @ params["w3"] + params["b3"], 0.0)
        raw = h @ params["w4"] + params["b4"]
        feat = (raw - rle_feat_mean) / (rle_feat_std + 1e-5)
        reward = jnp.sum(feat * goals, axis=1) / jnp.linalg.norm(feat, axis=1)
        return reward, raw, feat

    def check(B, tb, k):
        k_obs, k_goal = jax.random.split(k)
        obs = jax.random.normal(k_obs, (B, INPUT_SIZE), dtype=jnp.float32)
        goals = jax.random.normal(k_goal, (B, FEATURE_SIZE), dtype=jnp.float32)
        goals = goals / jnp.linalg.norm(goals, axis=1, keepdims=True)

        out = compute_rle_feat(obs, goals, params, rle_feat_mean, rle_feat_std,
                               tb=tb)
        jax.block_until_ready(out)
        reward, raw, feat, (bmean, bvar, bcount) = out

        reward_r, raw_r, feat_r = reference(obs, goals)
        assert jnp.allclose(raw, raw_r, atol=1e-4, rtol=1e-4)
        assert jnp.allclose(feat, feat_r, atol=1e-4, rtol=1e-4)
        assert jnp.allclose(reward, reward_r, atol=1e-4, rtol=1e-4)
        # fused RunningMeanStd batch statistics
        assert bcount == B
        assert jnp.allclose(bmean, jnp.mean(feat_r, axis=0, keepdims=True),
                            atol=1e-4, rtol=1e-4)
        assert jnp.allclose(bvar, jnp.var(feat_r, axis=0, keepdims=True),
                            atol=1e-4, rtol=1e-4)

    check(B=8, tb=256, k=k_c1)   # single tile, no padding
    check(B=12, tb=8, k=k_c2)    # multi-tile batch grid + masked padded tail

    print("KERNEL_OK")
</pallas_src>

<mosaic_0001>
module attributes {stable_mosaic.version = 11 : i64} {
  func.func @_rle_kernel(%arg0: i32, %arg1: memref<8x16xf32, #tpu.memory_space<vmem>>, %arg2: memref<8x8xf32, #tpu.memory_space<vmem>>, %arg3: memref<16x64xf32, #tpu.memory_space<vmem>>, %arg4: memref<1x64xf32, #tpu.memory_space<vmem>>, %arg5: memref<64x64xf32, #tpu.memory_space<vmem>>, %arg6: memref<1x64xf32, #tpu.memory_space<vmem>>, %arg7: memref<64x64xf32, #tpu.memory_space<vmem>>, %arg8: memref<1x64xf32, #tpu.memory_space<vmem>>, %arg9: memref<64x8xf32, #tpu.memory_space<vmem>>, %arg10: memref<1x8xf32, #tpu.memory_space<vmem>>, %arg11: memref<1x8xf32, #tpu.memory_space<vmem>>, %arg12: memref<1x8xf32, #tpu.memory_space<vmem>>, %arg13: memref<8x128xf32, #tpu.memory_space<vmem>>, %arg14: memref<8x8xf32, #tpu.memory_space<vmem>>, %arg15: memref<8x8xf32, #tpu.memory_space<vmem>>, %arg16: memref<1x1x8xf32, #tpu.memory_space<vmem>>, %arg17: memref<1x1x8xf32, #tpu.memory_space<vmem>>) attributes {dimension_semantics = [#tpu.dimension_semantics<parallel>], iteration_bounds = array<i64: 1>, scalar_prefetch = 0 : i64, scratch_operands = 0 : i64, tpu.core_type = #tpu.core_type<tc>, window_params = [{transform_indices = @transform_0, window_bounds = array<i64: 8, 16>}, {transform_indices = @transform_1, window_bounds = array<i64: 8, 8>}, {pipeline_mode = #tpu.pipeline_mode<synchronous>, transform_indices = @transform_2, window_bounds = array<i64: 16, 64>}, {pipeline_mode = #tpu.pipeline_mode<synchronous>, transform_indices = @transform_3, window_bounds = array<i64: 1, 64>}, {pipeline_mode = #tpu.pipeline_mode<synchronous>, transform_indices = @transform_4, window_bounds = array<i64: 64, 64>}, {pipeline_mode = #tpu.pipeline_mode<synchronous>, transform_indices = @transform_5, window_bounds = array<i64: 1, 64>}, {pipeline_mode = #tpu.pipeline_mode<synchronous>, transform_indices = @transform_6, window_bounds = array<i64: 64, 64>}, {pipeline_mode = #tpu.pipeline_mode<synchronous>, transform_indices = @transform_7, window_bounds = array<i64: 1, 64>}, {pipeline_mode = #tpu.pipeline_mode<synchronous>, transform_indices = @transform_8, window_bounds = array<i64: 64, 8>}, {pipeline_mode = #tpu.pipeline_mode<synchronous>, transform_indices = @transform_9, window_bounds = array<i64: 1, 8>}, {pipeline_mode = #tpu.pipeline_mode<synchronous>, transform_indices = @transform_10, window_bounds = array<i64: 1, 8>}, {pipeline_mode = #tpu.pipeline_mode<synchronous>, transform_indices = @transform_11, window_bounds = array<i64: 1, 8>}, {transform_indices = @transform_12, window_bounds = array<i64: 8, 128>}, {transform_indices = @transform_13, window_bounds = array<i64: 8, 8>}, {transform_indices = @transform_14, window_bounds = array<i64: 8, 8>}, {transform_indices = @transform_15, window_bounds = array<i64: 1, 1, 8>}, {transform_indices = @transform_16, window_bounds = array<i64: 1, 1, 8>}]} {
    %c0 = arith.constant 0 : index
    %c0_0 = arith.constant 0 : index
    %0 = vector.load %arg1[%c0, %c0_0] : memref<8x16xf32, #tpu.memory_space<vmem>>, vector<8x16xf32>
    %c0_1 = arith.constant 0 : index
    %c0_2 = arith.constant 0 : index
    %1 = vector.load %arg3[%c0_1, %c0_2] : memref<16x64xf32, #tpu.memory_space<vmem>>, vector<16x64xf32>
    %cst = arith.constant dense<0.000000e+00> : vector<8x64xf32>
    %2 = tpu.matmul %0, %1, %cst {dimension_numbers = #tpu.dot_dimension_numbers<[1], [0], [0], [1], [0, 0, 1, 1], [], []>} : vector<8x16xf32>, vector<16x64xf32>, vector<8x64xf32> -> vector<8x64xf32>
    %c0_3 = arith.constant 0 : index
    %c0_4 = arith.constant 0 : index
    %3 = vector.load %arg4[%c0_3, %c0_4] : memref<1x64xf32, #tpu.memory_space<vmem>>, vector<1x64xf32>
    %4 = vector.broadcast %3 : vector<1x64xf32> to vector<8x64xf32>
    %5 = arith.addf %2, %4 : vector<8x64xf32>
    %cst_5 = arith.constant 0.000000e+00 : f32
    %6 = vector.broadcast %cst_5 : f32 to vector<8x64xf32>
    %7 = arith.maximumf %5, %6 : vector<8x64xf32>
    %c0_6 = arith.constant 0 : index
    %c0_7 = arith.constant 0 : index
    %8 = vector.load %arg5[%c0_6, %c0_7] : memref<64x64xf32, #tpu.memory_space<vmem>>, vector<64x64xf32>
    %cst_8 = arith.constant dense<0.000000e+00> : vector<8x64xf32>
    %9 = tpu.matmul %7, %8, %cst_8 {dimension_numbers = #tpu.dot_dimension_numbers<[1], [0], [0], [1], [0, 0, 1, 1], [], []>} : vector<8x64xf32>, vector<64x64xf32>, vector<8x64xf32> -> vector<8x64xf32>
    %c0_9 = arith.constant 0 : index
    %c0_10 = arith.constant 0 : index
    %10 = vector.load %arg6[%c0_9, %c0_10] : memref<1x64xf32, #tpu.memory_space<vmem>>, vector<1x64xf32>
    %11 = vector.broadcast %10 : vector<1x64xf32> to vector<8x64xf32>
    %12 = arith.addf %9, %11 : vector<8x64xf32>
    %cst_11 = arith.constant 0.000000e+00 : f32
    %13 = vector.broadcast %cst_11 : f32 to vector<8x64xf32>
    %14 = arith.maximumf %12, %13 : vector<8x64xf32>
    %c0_12 = arith.constant 0 : index
    %c0_13 = arith.constant 0 : index
    %15 = vector.load %arg7[%c0_12, %c0_13] : memref<64x64xf32, #tpu.memory_space<vmem>>, vector<64x64xf32>
    %cst_14 = arith.constant dense<0.000000e+00> : vector<8x64xf32>
    %16 = tpu.matmul %14, %15, %cst_14 {dimension_numbers = #tpu.dot_dimension_numbers<[1], [0], [0], [1], [0, 0, 1, 1], [], []>} : vector<8x64xf32>, vector<64x64xf32>, vector<8x64xf32> -> vector<8x64xf32>
    %c0_15 = arith.constant 0 : index
    %c0_16 = arith.constant 0 : index
    %17 = vector.load %arg8[%c0_15, %c0_16] : memref<1x64xf32, #tpu.memory_space<vmem>>, vector<1x64xf32>
    %18 = vector.broadcast %17 : vector<1x64xf32> to vector<8x64xf32>
    %19 = arith.addf %16, %18 : vector<8x64xf32>
    %cst_17 = arith.constant 0.000000e+00 : f32
    %20 = vector.broadcast %cst_17 : f32 to vector<8x64xf32>
    %21 = arith.maximumf %19, %20 : vector<8x64xf32>
    %c0_18 = arith.constant 0 : index
    %c0_19 = arith.constant 0 : index
    %22 = vector.load %arg9[%c0_18, %c0_19] : memref<64x8xf32, #tpu.memory_space<vmem>>, vector<64x8xf32>
    %cst_20 = arith.constant dense<0.000000e+00> : vector<8x8xf32>
    %23 = tpu.matmul %21, %22, %cst_20 {dimension_numbers = #tpu.dot_dimension_numbers<[1], [0], [0], [1], [0, 0, 1, 1], [], []>} : vector<8x64xf32>, vector<64x8xf32>, vector<8x8xf32> -> vector<8x8xf32>
    %c0_21 = arith.constant 0 : index
    %c0_22 = arith.constant 0 : index
    %24 = vector.load %arg10[%c0_21, %c0_22] : memref<1x8xf32, #tpu.memory_space<vmem>>, vector<1x8xf32>
    %25 = vector.broadcast %24 : vector<1x8xf32> to vector<8x8xf32>
    %26 = arith.addf %23, %25 : vector<8x8xf32>
    %c0_23 = arith.constant 0 : index
    %c0_24 = arith.constant 0 : index
    %27 = vector.load %arg11[%c0_23, %c0_24] : memref<1x8xf32, #tpu.memory_space<vmem>>, vector<1x8xf32>
    %28 = vector.broadcast %27 : vector<1x8xf32> to vector<8x8xf32>
    %29 = arith.subf %26, %28 : vector<8x8xf32>
    %c0_25 = arith.constant 0 : index
    %c0_26 = arith.constant 0 : index
    %30 = vector.load %arg12[%c0_25, %c0_26] : memref<1x8xf32, #tpu.memory_space<vmem>>, vector<1x8xf32>
    %31 = vector.broadcast %30 : vector<1x8xf32> to vector<8x8xf32>
    %32 = arith.mulf %29, %31 : vector<8x8xf32>
    %c0_27 = arith.constant 0 : index
    %c0_28 = arith.constant 0 : index
    %33 = vector.load %arg14[%c0_27, %c0_28] : memref<8x8xf32, #tpu.memory_space<vmem>>, vector<8x8xf32>
    tpu.vector_store %arg14[%c0_27, %c0_28], %26 {strides = array<i32>} : memref<8x8xf32, #tpu.memory_space<vmem>>, vector<8x8xf32>,
    %c0_29 = arith.constant 0 : index
    %c0_30 = arith.constant 0 : index
    %34 = vector.load %arg15[%c0_29, %c0_30] : memref<8x8xf32, #tpu.memory_space<vmem>>, vector<8x8xf32>
    tpu.vector_store %arg15[%c0_29, %c0_30], %32 {strides = array<i32>} : memref<8x8xf32, #tpu.memory_space<vmem>>, vector<8x8xf32>,
    %c0_31 = arith.constant 0 : index
    %c0_32 = arith.constant 0 : index
    %35 = vector.load %arg2[%c0_31, %c0_32] : memref<8x8xf32, #tpu.memory_space<vmem>>, vector<8x8xf32>
    %36 = arith.mulf %32, %35 : vector<8x8xf32>
    %cst_33 = arith.constant dense<0.000000e+00> : vector<8xf32>
    %37 = vector.multi_reduction <add>, %36, %cst_33 [1] : vector<8x8xf32> to vector<8xf32>
    %38 = vector.shape_cast %37 : vector<8xf32> to vector<8x1xf32>
    %39 = arith.mulf %32, %32 : vector<8x8xf32>
    %cst_34 = arith.constant dense<0.000000e+00> : vector<8xf32>
    %40 = vector.multi_reduction <add>, %39, %cst_34 [1] : vector<8x8xf32> to vector<8xf32>
    %41 = vector.shape_cast %40 : vector<8xf32> to vector<8x1xf32>
    %cst_35 = arith.constant 9.99999996E-13 : f32
    %42 = vector.broadcast %cst_35 : f32 to vector<8x1xf32>
    %43 = arith.addf %41, %42 : vector<8x1xf32>
    %44 = math.rsqrt %43 : vector<8x1xf32>
    %45 = arith.mulf %38, %44 : vector<8x1xf32>
    %46 = vector.shape_cast %45 : vector<8x1xf32> to vector<8x1xf32>
    %47 = vector.broadcast %46 : vector<8x1xf32> to vector<8x128xf32>
    %c0_36 = arith.constant 0 : index
    %c0_37 = arith.constant 0 : index
    %48 = vector.load %arg13[%c0_36, %c0_37] : memref<8x128xf32, #tpu.memory_space<vmem>>, vector<8x128xf32>
    tpu.vector_store %arg13[%c0_36, %c0_37], %47 {strides = array<i32>} : memref<8x128xf32, #tpu.memory_space<vmem>>, vector<8x128xf32>,
    %c8_i32 = arith.constant 8 : i32
    %49 = arith.muli %arg0, %c8_i32 : i32
    %50 = tpu.iota {dimensions = array<i32: 0>} : vector<8x1xi32>
    %51 = vector.broadcast %49 : i32 to vector<8x1xi32>
    %52 = arith.addi %51, %50 : vector<8x1xi32>
    %c8_i32_38 = arith.constant 8 : i32
    %53 = vector.broadcast %c8_i32_38 : i32 to vector<8x1xi32>
    %54 = arith.cmpi slt, %52, %53 : vector<8x1xi32>
    %55 = arith.extui %54 : vector<8x1xi1> to vector<8x1xi32>
    %56 = arith.sitofp %55 : vector<8x1xi32> to vector<8x1xf32>
    %57 = vector.broadcast %56 : vector<8x1xf32> to vector<8x8xf32>
    %58 = arith.mulf %32, %57 : vector<8x8xf32>
    %cst_39 = arith.constant dense<0.000000e+00> : vector<8xf32>
    %59 = vector.multi_reduction <add>, %58, %cst_39 [0] : vector<8x8xf32> to vector<8xf32>
    %60 = vector.shape_cast %59 : vector<8xf32> to vector<1x8xf32>
    %61 = vector.shape_cast %60 : vector<1x8xf32> to vector<1x1x8xf32>
    %c0_40 = arith.constant 0 : index
    %c0_41 = arith.constant 0 : index
    %c0_42 = arith.constant 0 : index
    %62 = vector.load %arg16[%c0_40, %c0_41, %c0_42] : memref<1x1x8xf32, #tpu.memory_space<vmem>>, vector<1x1x8xf32>
    tpu.vector_store %arg16[%c0_40, %c0_41, %c0_42], %61 {strides = array<i32>} : memref<1x1x8xf32, #tpu.memory_space<vmem>>, vector<1x1x8xf32>,
    %63 = arith.mulf %58, %58 : vector<8x8xf32>
    %cst_43 = arith.constant dense<0.000000e+00> : vector<8xf32>
    %64 = vector.multi_reduction <add>, %63, %cst_43 [0] : vector<8x8xf32> to vector<8xf32>
    %65 = vector.shape_cast %64 : vector<8xf32> to vector<1x8xf32>
    %66 = vector.shape_cast %65 : vector<1x8xf32> to vector<1x1x8xf32>
    %c0_44 = arith.constant 0 : index
    %c0_45 = arith.constant 0 : index
    %c0_46 = arith.constant 0 : index
    %67 = vector.load %arg17[%c0_44, %c0_45, %c0_46] : memref<1x1x8xf32, #tpu.memory_space<vmem>>, vector<1x1x8xf32>
    tpu.vector_store %arg17[%c0_44, %c0_45, %c0_46], %66 {strides = array<i32>} : memref<1x1x8xf32, #tpu.memory_space<vmem>>, vector<1x1x8xf32>,
    return
  }
  func.func @transform_0(%arg0: i32) -> (i32, i32) {
    %c0_i32 = arith.constant 0 : i32
    %c0_i32_0 = arith.constant 0 : i32
    return %arg0, %c0_i32 : i32, i32
  }
  func.func @transform_1(%arg0: i32) -> (i32, i32) {
    %c0_i32 = arith.constant 0 : i32
    %c0_i32_0 = arith.constant 0 : i32
    return %arg0, %c0_i32 : i32, i32
  }
  func.func @transform_2(%arg0: i32) -> (i32, i32) {
    %c0_i32 = arith.constant 0 : i32
    %c0_i32_0 = arith.constant 0 : i32
    %c0_i32_1 = arith.constant 0 : i32
    return %c0_i32, %c0_i32_0 : i32, i32
  }
  func.func @transform_3(%arg0: i32) -> (i32, i32) {
    %c0_i32 = arith.constant 0 : i32
    %c0_i32_0 = arith.constant 0 : i32
    %c0_i32_1 = arith.constant 0 : i32
    return %c0_i32, %c0_i32_0 : i32, i32
  }
  func.func @transform_4(%arg0: i32) -> (i32, i32) {
    %c0_i32 = arith.constant 0 : i32
    %c0_i32_0 = arith.constant 0 : i32
    %c0_i32_1 = arith.constant 0 : i32
    return %c0_i32, %c0_i32_0 : i32, i32
  }
  func.func @transform_5(%arg0: i32) -> (i32, i32) {
    %c0_i32 = arith.constant 0 : i32
    %c0_i32_0 = arith.constant 0 : i32
    %c0_i32_1 = arith.constant 0 : i32
    return %c0_i32, %c0_i32_0 : i32, i32
  }
  func.func @transform_6(%arg0: i32) -> (i32, i32) {
    %c0_i32 = arith.constant 0 : i32
    %c0_i32_0 = arith.constant 0 : i32
    %c0_i32_1 = arith.constant 0 : i32
    return %c0_i32, %c0_i32_0 : i32, i32
  }
  func.func @transform_7(%arg0: i32) -> (i32, i32) {
    %c0_i32 = arith.constant 0 : i32
    %c0_i32_0 = arith.constant 0 : i32
    %c0_i32_1 = arith.constant 0 : i32
    return %c0_i32, %c0_i32_0 : i32, i32
  }
  func.func @transform_8(%arg0: i32) -> (i32, i32) {
    %c0_i32 = arith.constant 0 : i32
    %c0_i32_0 = arith.constant 0 : i32
    %c0_i32_1 = arith.constant 0 : i32
    return %c0_i32, %c0_i32_0 : i32, i32
  }
  func.func @transform_9(%arg0: i32) -> (i32, i32) {
    %c0_i32 = arith.constant 0 : i32
    %c0_i32_0 = arith.constant 0 : i32
    %c0_i32_1 = arith.constant 0 : i32
    return %c0_i32, %c0_i32_0 : i32, i32
  }
  func.func @transform_10(%arg0: i32) -> (i32, i32) {
    %c0_i32 = arith.constant 0 : i32
    %c0_i32_0 = arith.constant 0 : i32
    %c0_i32_1 = arith.constant 0 : i32
    return %c0_i32, %c0_i32_0 : i32, i32
  }
  func.func @transform_11(%arg0: i32) -> (i32, i32) {
    %c0_i32 = arith.constant 0 : i32
    %c0_i32_0 = arith.constant 0 : i32
    %c0_i32_1 = arith.constant 0 : i32
    return %c0_i32, %c0_i32_0 : i32, i32
  }
  func.func @transform_12(%arg0: i32) -> (i32, i32) {
    %c0_i32 = arith.constant 0 : i32
    %c0_i32_0 = arith.constant 0 : i32
    return %arg0, %c0_i32 : i32, i32
  }
  func.func @transform_13(%arg0: i32) -> (i32, i32) {
    %c0_i32 = arith.constant 0 : i32
    %c0_i32_0 = arith.constant 0 : i32
    return %arg0, %c0_i32 : i32, i32
  }
  func.func @transform_14(%arg0: i32) -> (i32, i32) {
    %c0_i32 = arith.constant 0 : i32
    %c0_i32_0 = arith.constant 0 : i32
    return %arg0, %c0_i32 : i32, i32
  }
  func.func @transform_15(%arg0: i32) -> (i32, i32, i32) {
    %c0_i32 = arith.constant 0 : i32
    %c0_i32_0 = arith.constant 0 : i32
    %c0_i32_1 = arith.constant 0 : i32
    return %arg0, %c0_i32, %c0_i32_0 : i32, i32, i32
  }
  func.func @transform_16(%arg0: i32) -> (i32, i32, i32) {
    %c0_i32 = arith.constant 0 : i32
    %c0_i32_0 = arith.constant 0 : i32
    %c0_i32_1 = arith.constant 0 : i32
    return %arg0, %c0_i32, %c0_i32_0 : i32, i32, i32
  }
}

</mosaic_0001>

<llo_original>
// kernel: tpu_custom_call.1
$region0: #{tpu_custom_call.1}
  #allocation0 [shape = 'u32[]', space=smem, size = 0x4, offset = 0x4, fixed_abs, tag = 'smem constant byte address 0x4 - core index']
  #allocation1 [shape = 'u32[144,128]{1,0:T(1,128)}', space=vmem, size = 0x12000, scoped, tag = 'internal scratch']
  %s0 = inlined_call_operand.vmem [shape: f32[8,16], index: 0, kind: input, shape index: {}]
  %s1 = inlined_call_operand.hbm [shape: f32[8,8], index: 1, kind: input, shape index: {}]
  %s2 = inlined_call_operand.hbm [shape: f32[16,64], index: 2, kind: input, shape index: {}]
  %s3 = inlined_call_operand.vmem [shape: f32[1,64], index: 3, kind: input, shape index: {}]
  %s4 = inlined_call_operand.vmem [shape: f32[64,64], index: 4, kind: input, shape index: {}]
  %s5 = inlined_call_operand.vmem [shape: f32[1,64], index: 5, kind: input, shape index: {}]
  %s6 = inlined_call_operand.hbm [shape: f32[64,64], index: 6, kind: input, shape index: {}]
  %s7 = inlined_call_operand.vmem [shape: f32[1,64], index: 7, kind: input, shape index: {}]
  %s8 = inlined_call_operand.vmem [shape: f32[64,8], index: 8, kind: input, shape index: {}]
  %s9 = inlined_call_operand.vmem [shape: f32[1,8], index: 9, kind: input, shape index: {}]
  %s10 = inlined_call_operand.vmem [shape: f32[1,8], index: 10, kind: input, shape index: {}]
  %s11 = inlined_call_operand.vmem [shape: f32[1,8], index: 11, kind: input, shape index: {}]
  %s12 = inlined_call_operand.hbm [shape: f32[8,128], index: 12, kind: output, shape index: {0}]
  %s13 = inlined_call_operand.hbm [shape: f32[8,8], index: 13, kind: output, shape index: {1}]
  %s14 = inlined_call_operand.hbm [shape: f32[8,8], index: 14, kind: output, shape index: {2}]
  %s15 = inlined_call_operand.hbm [shape: f32[1,1,8], index: 15, kind: output, shape index: {3}]
  %s16 = inlined_call_operand.hbm [shape: f32[1,1,8], index: 16, kind: output, shape index: {4}]
  %17 = xla_tuple %s12, %s13, %s14, %s15, %s16
  %s18 = sld [smem:[#allocation0]]
  $region102: #{tpu_custom_call.1} parent=0
    _
  %s20 = ssub.s32 1, %s18
  %s21 = scalar_select 0, %s20, %s18
  $region1: #{tpu_custom_call.1} parent=0
    #allocation2 [shape = 'u8[4096]{0}', space=vmem, size = 0x1000, scoped, tag = 'input window, operand 1, single buffered']
    #allocation3 [shape = 's32[1]{0}', space=sflag, size = 0x4, scoped, tag = 'scoped memory for tpu_custom_call.1']
    #allocation4 [shape = 's32[1]{0}', space=sflag, size = 0x4, scoped, tag = 'scoped memory for tpu_custom_call.1']
    #allocation5 [shape = 'u8[8192]{0}', space=vmem, size = 0x2000, scoped, tag = 'input window, operand 2, single buffered']
    #allocation6 [shape = 's32[1]{0}', space=sflag, size = 0x4, scoped, tag = 'scoped memory for tpu_custom_call.1']
    #allocation7 [shape = 'u8[32768]{0}', space=vmem, size = 0x8000, scoped, tag = 'input window, operand 6, single buffered']
    #allocation8 [shape = 'u8[4096]{0}', space=vmem, size = 0x1000, scoped, tag = 'output window, operand 0, single buffered']
    #allocation9 [shape = 'u8[4096]{0}', space=vmem, size = 0x1000, scoped, tag = 'output window, operand 1, single buffered']
    #allocation10 [shape = 's32[1]{0}', space=sflag, size = 0x4, scoped, tag = 'scoped memory for tpu_custom_call.1']
    #allocation11 [shape = 'u8[4096]{0}', space=vmem, size = 0x1000, scoped, tag = 'output window, operand 2, single buffered']
    #allocation12 [shape = 'u8[512]{0}', space=vmem, size = 0x400, scoped, tag = 'output window, operand 3, single buffered']
    #allocation13 [shape = 's32[1]{0}', space=sflag, size = 0x4, scoped, tag = 'scoped memory for tpu_custom_call.1']
    #allocation14 [shape = 'u8[512]{0}', space=vmem, size = 0x400, scoped, tag = 'output window, operand 4, single buffered']
    %22 = vsyncpa [#allocation3], 0
    %23 = vsyncpa [#allocation6], 0
    %24 = vsyncpa [#allocation4], 0
    %25 = vsyncpa [#allocation10], 0
    %26 = vsyncpa [#allocation13], 0
    // Predicated region
    $region2: #{tpu_custom_call.1} parent=1 // pred_check
      _
    $region3: #{tpu_custom_call.1} parent=1 // pred_check_branch
      %28 = sbr.rel (0) target = $region5
    $region4: #{tpu_custom_call.1} parent=1 // pred_region
      _
    $region5: #{tpu_custom_call.1} parent=1 // pred_fallthru
      _
    // Predicated region
    $region6: #{tpu_custom_call.1} parent=1 // pred_check
      _
    $region7: #{tpu_custom_call.1} parent=1 // pred_check_branch
      %30 = sbr.rel (0) target = $region9
    $region8: #{tpu_custom_call.1} parent=1 // pred_region
      %s32 = ssub.s32 128, 128
      %33 = vsyncadd [#allocation3], %s32
      %s35 = sshll.u32 [#allocation2], 4
      %s36 = int_to_ptr.vmem [resolvable:$true] %s35
      %38 = dma.hbm_to_vmem [thread:$0]  %s1, 128, %s36, [#allocation3]
    $region9: #{tpu_custom_call.1} parent=1 // pred_fallthru
      _
    // Predicated region
    $region10: #{tpu_custom_call.1} parent=1 // pred_check
      _
    $region11: #{tpu_custom_call.1} parent=1 // pred_check_branch
      %40 = sbr.rel (0) target = $region13
    $region12: #{tpu_custom_call.1} parent=1 // pred_region
      %s42 = ssub.s32 256, 256
      %43 = vsyncadd [#allocation6], %s42
      %s44 = sshll.u32 [#allocation5], 4
      %s45 = int_to_ptr.vmem [resolvable:$true] %s44
      %50 = dma.hbm_to_vmem [thread:$0]  %s2, 256, %s45, [#allocation6], 128, 128, 8
    $region13: #{tpu_custom_call.1} parent=1 // pred_fallthru
      _
    // Predicated region
    $region14: #{tpu_custom_call.1} parent=1 // pred_check
      _
    $region15: #{tpu_custom_call.1} parent=1 // pred_check_branch
      %52 = sbr.rel (0) target = $region17
    $region16: #{tpu_custom_call.1} parent=1 // pred_region
      _
    $region17: #{tpu_custom_call.1} parent=1 // pred_fallthru
      _
    // Predicated region
    $region18: #{tpu_custom_call.1} parent=1 // pred_check
      _
    $region19: #{tpu_custom_call.1} parent=1 // pred_check_branch
      %54 = sbr.rel (0) target = $region21
    $region20: #{tpu_custom_call.1} parent=1 // pred_region
      _
    $region21: #{tpu_custom_call.1} parent=1 // pred_fallthru
      _
    // Predicated region
    $region22: #{tpu_custom_call.1} parent=1 // pred_check
      _
    $region23: #{tpu_custom_call.1} parent=1 // pred_check_branch
      %56 = sbr.rel (0) target = $region25
    $region24: #{tpu_custom_call.1} parent=1 // pred_region
      _
    $region25: #{tpu_custom_call.1} parent=1 // pred_fallthru
      _
    // Predicated region
    $region26: #{tpu_custom_call.1} parent=1 // pred_check
      _
    $region27: #{tpu_custom_call.1} parent=1 // pred_check_branch
      %58 = sbr.rel (0) target = $region29
    $region28: #{tpu_custom_call.1} parent=1 // pred_region
      %s60 = ssub.s32 1024, 1024
      %61 = vsyncadd [#allocation6], %s60
      %s62 = sshll.u32 [#allocation7], 4
      %s63 = int_to_ptr.vmem [resolvable:$true] %s62
      %68 = dma.hbm_to_vmem [thread:$0]  %s6, 1024, %s63, [#allocation6], 128, 128, 8
    $region29: #{tpu_custom_call.1} parent=1 // pred_fallthru
      _
    // Predicated region
    $region30: #{tpu_custom_call.1} parent=1 // pred_check
      _
    $region31: #{tpu_custom_call.1} parent=1 // pred_check_branch
      %70 = sbr.rel (0) target = $region33
    $region32: #{tpu_custom_call.1} parent=1 // pred_region
      _
    $region33: #{tpu_custom_call.1} parent=1 // pred_fallthru
      _
    // Predicated region
    $region34: #{tpu_custom_call.1} parent=1 // pred_check
      _
    $region35: #{tpu_custom_call.1} parent=1 // pred_check_branch
      %72 = sbr.rel (0) target = $region37
    $region36: #{tpu_custom_call.1} parent=1 // pred_region
      _
    $region37: #{tpu_custom_call.1} parent=1 // pred_fallthru
      _
    // Predicated region
    $region38: #{tpu_custom_call.1} parent=1 // pred_check
      _
    $region39: #{tpu_custom_call.1} parent=1 // pred_check_branch
      %74 = sbr.rel (0) target = $region41
    $region40: #{tpu_custom_call.1} parent=1 // pred_region
      _
    $region41: #{tpu_custom_call.1} parent=1 // pred_fallthru
      _
    // Predicated region
    $region42: #{tpu_custom_call.1} parent=1 // pred_check
      _
    $region43: #{tpu_custom_call.1} parent=1 // pred_check_branch
      %76 = sbr.rel (0) target = $region45
    $region44: #{tpu_custom_call.1} parent=1 // pred_region
      _
    $region45: #{tpu_custom_call.1} parent=1 // pred_fallthru
      _
    // Predicated region
    $region46: #{tpu_custom_call.1} parent=1 // pred_check
      _
    $region47: #{tpu_custom_call.1} parent=1 // pred_check_branch
      %78 = sbr.rel (0) target = $region49
    $region48: #{tpu_custom_call.1} parent=1 // pred_region
      _
    $region49: #{tpu_custom_call.1} parent=1 // pred_fallthru
      _
    // Predicated region
    $region50: #{tpu_custom_call.1} parent=1 // pred_check
      _
    $region51: #{tpu_custom_call.1} parent=1 // pred_check_branch
      %80 = sbr.rel (0) target = $region53
    $region52: #{tpu_custom_call.1} parent=1 // pred_region
      %81 = dma.done [#allocation3], 128
    $region53: #{tpu_custom_call.1} parent=1 // pred_fallthru
      _
    // Predicated region
    $region54: #{tpu_custom_call.1} parent=1 // pred_check
      _
    $region55: #{tpu_custom_call.1} parent=1 // pred_check_branch
      %83 = sbr.rel (0) target = $region57
    $region56: #{tpu_custom_call.1} parent=1 // pred_region
      %84 = dma.done [#allocation6], 256
    $region57: #{tpu_custom_call.1} parent=1 // pred_fallthru
      _
    // Predicated region
    $region58: #{tpu_custom_call.1} parent=1 // pred_check
      _
    $region59: #{tpu_custom_call.1} parent=1 // pred_check_branch
      %86 = sbr.rel (0) target = $region61
    $region60: #{tpu_custom_call.1} parent=1 // pred_region
      %87 = dma.done [#allocation6], 1024
    $region61: #{tpu_custom_call.1} parent=1 // pred_fallthru
      _
    %v88 = vld [vmem:[%s0] sm:$0xff]
    %v89 = vld [vmem:[#allocation5] sm:$0xff]
    %v90 = vld [vmem:[#allocation5 + $0x8] sm:$0xff]
    %v91 = vld [vmem:[%s3] sm:$0x1]
    %v93 = vlaneseq
    %v94 = vshrl.u32 %v93, 7
    %v95 = vsub.s32 0, %v94
    %v96 = vrot.slane %v91, %v95
    %vm98 = vcmask 130048
    %v100 = vsel %vm98, %v88, 0
    %102 = vmatprep.subr.mxu0 0.0
    %103 = vmatpush1.msra.mxu0 0.0
    %104 = vmatprep.subr.mxu0 0.0
    %105 = vmatpush1.msra.mxu0 0.0
    %106 = vmatprep.subr.mxu0 0.0
    %107 = vmatpush1.msra.mxu0 0.0
    %108 = vmatprep.subr.mxu0 0.0
    %109 = vmatpush1.msra.mxu0 0.0
    %110 = vmatprep.subr.mxu0 0.0
    %111 = vmatpush1.msra.mxu0 0.0
    %112 = vmatprep.subr.mxu0 0.0
    %113 = vmatpush1.msra.mxu0 0.0
    %114 = vmatprep.subr.mxu0 0.0
    %115 = vmatpush1.msra.mxu0 0.0
    %116 = vmatprep.subr.mxu0 0.0
    %117 = vmatpush1.msra.mxu0 0.0
    %118 = vmatprep.subr.mxu0 0.0
    %119 = vmatpush1.msra.mxu0 0.0
    %120 = vmatprep.subr.mxu0 0.0
    %121 = vmatpush1.msra.mxu0 0.0
    %122 = vmatprep.subr.mxu0 0.0
    %123 = vmatpush1.msra.mxu0 0.0
    %124 = vmatprep.subr.mxu0 0.0
    %125 = vmatpush1.msra.mxu0 0.0
    %126 = vmatprep.subr.mxu0 0.0
    %127 = vmatpush1.msra.mxu0 0.0
    %128 = vmatprep.subr.mxu0 0.0
    %129 = vmatpush1.msra.mxu0 0.0
    %130 = vmatprep.subr.mxu0 0.0
    %131 = vmatpush1.msra.mxu0 %v90
    %132 = vmatprep.subr.mxu0 0.0
    %133 = vmatpush1.msra.mxu0 %v89
    %134 = vmatprep.subr.mxu0 0.0
    %135 = vmatpush2.msra.mxu0 0.0
    %136 = vmatprep.subr.mxu0 0.0
    %137 = vmatpush2.msra.mxu0 0.0
    %138 = vmatprep.subr.mxu0 0.0
    %139 = vmatpush2.msra.mxu0 0.0
    %140 = vmatprep.subr.mxu0 0.0
    %141 = vmatpush2.msra.mxu0 0.0
    %142 = vmatprep.subr.mxu0 0.0
    %143 = vmatpush2.msra.mxu0 0.0
    %144 = vmatprep.subr.mxu0 0.0
    %145 = vmatpush2.msra.mxu0 0.0
    %146 = vmatprep.subr.mxu0 0.0
    %147 = vmatpush2.msra.mxu0 0.0
    %148 = vmatprep.subr.mxu0 0.0
    %149 = vmatpush2.msra.mxu0 0.0
    %150 = vmatprep.subr.mxu0 0.0
    %151 = vmatpush2.msra.mxu0 0.0
    %152 = vmatprep.subr.mxu0 0.0
    %153 = vmatpush2.msra.mxu0 0.0
    %154 = vmatprep.subr.mxu0 0.0
    %155 = vmatpush2.msra.mxu0 0.0
    %156 = vmatprep.subr.mxu0 0.0
    %157 = vmatpush2.msra.mxu0 0.0
    %158 = vmatprep.subr.mxu0 0.0
    %159 = vmatpush2.msra.mxu0 0.0
    %160 = vmatprep.subr.mxu0 0.0
    %161 = vmatpush2.msra.mxu0 0.0
    %162 = vmatprep.subr.mxu0 0.0
    %163 = vmatpush2.msra.mxu0 0.0
    %164 = vmatprep.subr.mxu0 0.0
    %165 = vmatpush2.msra.mxu0 0.0
    %166 = vmatprep.mubr.f32.mxu0 0.0
    %167 = vmatmul.mubr.f32.gmra.mxu0 %v100
    %v168 = vpop.f32.mrf.mxu0
    %v169 = vadd.f32 %v96, %v168
    %v170 = vpop.f32.mrf.mxu0
    %171 = vdwg.mxu0
    %v172 = vmax.f32 %v169, 0.0
    %v173 = vld [vmem:[%s4] sm:$0xff]
    %v174 = vld [vmem:[%s4 + $0x8] sm:$0xff]
    %v175 = vld [vmem:[%s4 + $0x10] sm:$0xff]
    %v176 = vld [vmem:[%s4 + $0x18] sm:$0xff]
    %v177 = vld [vmem:[%s4 + $0x20] sm:$0xff]
    %v178 = vld [vmem:[%s4 + $0x28] sm:$0xff]
    %v179 = vld [vmem:[%s4 + $0x30] sm:$0xff]
    %v180 = vld [vmem:[%s4 + $0x38] sm:$0xff]
    %v181 = vld [vmem:[%s5] sm:$0x1]
    %v183 = vlaneseq
    %v184 = vshrl.u32 %v183, 7
    %v185 = vsub.s32 0, %v184
    %v186 = vrot.slane %v181, %v185
    %vm188 = vcmask 523264
    %v190 = vsel %vm188, %v172, 0
    %192 = vmatprep.subr.mxu0 0.0
    %193 = vmatpush1.msra.mxu0 0.0
    %194 = vmatprep.subr.mxu0 0.0
    %195 = vmatpush1.msra.mxu0 0.0
    %196 = vmatprep.subr.mxu0 0.0
    %197 = vmatpush1.msra.mxu0 0.0
    %198 = vmatprep.subr.mxu0 0.0
    %199 = vmatpush1.msra.mxu0 0.0
    %200 = vmatprep.subr.mxu0 0.0
    %201 = vmatpush1.msra.mxu0 0.0
    %202 = vmatprep.subr.mxu0 0.0
    %203 = vmatpush1.msra.mxu0 0.0
    %204 = vmatprep.subr.mxu0 0.0
    %205 = vmatpush1.msra.mxu0 0.0
    %206 = vmatprep.subr.mxu0 0.0
    %207 = vmatpush1.msra.mxu0 0.0
    %208 = vmatprep.subr.mxu0 0.0
    %209 = vmatpush1.msra.mxu0 %v180
    %210 = vmatprep.subr.mxu0 0.0
    %211 = vmatpush1.msra.mxu0 %v179
    %212 = vmatprep.subr.mxu0 0.0
    %213 = vmatpush1.msra.mxu0 %v178
    %214 = vmatprep.subr.mxu0 0.0
    %215 = vmatpush1.msra.mxu0 %v177
    %216 = vmatprep.subr.mxu0 0.0
    %217 = vmatpush1.msra.mxu0 %v176
    %218 = vmatprep.subr.mxu0 0.0
    %219 = vmatpush1.msra.mxu0 %v175
    %220 = vmatprep.subr.mxu0 0.0
    %221 = vmatpush1.msra.mxu0 %v174
    %222 = vmatprep.subr.mxu0 0.0
    %223 = vmatpush1.msra.mxu0 %v173
    %224 = vmatprep.subr.mxu0 0.0
    %225 = vmatpush2.msra.mxu0 0.0
    %226 = vmatprep.subr.mxu0 0.0
    %227 = vmatpush2.msra.mxu0 0.0
    %228 = vmatprep.subr.mxu0 0.0
    %229 = vmatpush2.msra.mxu0 0.0
    %230 = vmatprep.subr.mxu0 0.0
    %231 = vmatpush2.msra.mxu0 0.0
    %232 = vmatprep.subr.mxu0 0.0
    %233 = vmatpush2.msra.mxu0 0.0
    %234 = vmatprep.subr.mxu0 0.0
    %235 = vmatpush2.msra.mxu0 0.0
    %236 = vmatprep.subr.mxu0 0.0
    %237 = vmatpush2.msra.mxu0 0.0
    %238 = vmatprep.subr.mxu0 0.0
    %239 = vmatpush2.msra.mxu0 0.0
    %240 = vmatprep.subr.mxu0 0.0
    %241 = vmatpush2.msra.mxu0 0.0
    %242 = vmatprep.subr.mxu0 0.0
    %243 = vmatpush2.msra.mxu0 0.0
    %244 = vmatprep.subr.mxu0 0.0
    %245 = vmatpush2.msra.mxu0 0.0
    %246 = vmatprep.subr.mxu0 0.0
    %247 = vmatpush2.msra.mxu0 0.0
    %248 = vmatprep.subr.mxu0 0.0
    %249 = vmatpush2.msra.mxu0 0.0
    %250 = vmatprep.subr.mxu0 0.0
    %251 = vmatpush2.msra.mxu0 0.0
    %252 = vmatprep.subr.mxu0 0.0
    %253 = vmatpush2.msra.mxu0 0.0
    %254 = vmatprep.subr.mxu0 0.0
    %255 = vmatpush2.msra.mxu0 0.0
    %256 = vmatprep.mubr.f32.mxu0 0.0
    %257 = vmatmul.mubr.f32.gmra.mxu0 %v190
    %v258 = vpop.f32.mrf.mxu0
    %v259 = vadd.f32 %v186, %v258
    %v260 = vpop.f32.mrf.mxu0
    %261 = vdwg.mxu0
    %v262 = vmax.f32 %v259, 0.0
    %v263 = vld [vmem:[#allocation7] sm:$0xff]
    %v264 = vld [vmem:[#allocation7 + $0x8] sm:$0xff]
    %v265 = vld [vmem:[#allocation7 + $0x10] sm:$0xff]
    %v266 = vld [vmem:[#allocation7 + $0x18] sm:$0xff]
    %v267 = vld [vmem:[#allocation7 + $0x20] sm:$0xff]
    %v268 = vld [vmem:[#allocation7 + $0x28] sm:$0xff]
    %v269 = vld [vmem:[#allocation7 + $0x30] sm:$0xff]
    %v270 = vld [vmem:[#allocation7 + $0x38] sm:$0xff]
    %v271 = vld [vmem:[%s7] sm:$0x1]
    %v273 = vlaneseq
    %v274 = vshrl.u32 %v273, 7
    %v275 = vsub.s32 0, %v274
    %v276 = vrot.slane %v271, %v275
    %v279 = vsel %vm188, %v262, 0
    %281 = vmatprep.subr.mxu0 0.0
    %282 = vmatpush1.msra.mxu0 0.0
    %283 = vmatprep.subr.mxu0 0.0
    %284 = vmatpush1.msra.mxu0 0.0
    %285 = vmatprep.subr.mxu0 0.0
    %286 = vmatpush1.msra.mxu0 0.0
    %287 = vmatprep.subr.mxu0 0.0
    %288 = vmatpush1.msra.mxu0 0.0
    %289 = vmatprep.subr.mxu0 0.0
    %290 = vmatpush1.msra.mxu0 0.0
    %291 = vmatprep.subr.mxu0 0.0
    %292 = vmatpush1.msra.mxu0 0.0
    %293 = vmatprep.subr.mxu0 0.0
    %294 = vmatpush1.msra.mxu0 0.0
    %295 = vmatprep.subr.mxu0 0.0
    %296 = vmatpush1.msra.mxu0 0.0
    %297 = vmatprep.subr.mxu0 0.0
    %298 = vmatpush1.msra.mxu0 %v270
    %299 = vmatprep.subr.mxu0 0.0
    %300 = vmatpush1.msra.mxu0 %v269
    %301 = vmatprep.subr.mxu0 0.0
    %302 = vmatpush1.msra.mxu0 %v268
    %303 = vmatprep.subr.mxu0 0.0
    %304 = vmatpush1.msra.mxu0 %v267
    %305 = vmatprep.subr.mxu0 0.0
    %306 = vmatpush1.msra.mxu0 %v266
    %307 = vmatprep.subr.mxu0 0.0
    %308 = vmatpush1.msra.mxu0 %v265
    %309 = vmatprep.subr.mxu0 0.0
    %310 = vmatpush1.msra.mxu0 %v264
    %311 = vmatprep.subr.mxu0 0.0
    %312 = vmatpush1.msra.mxu0 %v263
    %313 = vmatprep.subr.mxu0 0.0
    %314 = vmatpush2.msra.mxu0 0.0
    %315 = vmatprep.subr.mxu0 0.0
    %316 = vmatpush2.msra.mxu0 0.0
    %317 = vmatprep.subr.mxu0 0.0
    %318 = vmatpush2.msra.mxu0 0.0
    %319 = vmatprep.subr.mxu0 0.0
    %320 = vmatpush2.msra.mxu0 0.0
    %321 = vmatprep.subr.mxu0 0.0
    %322 = vmatpush2.msra.mxu0 0.0
    %323 = vmatprep.subr.mxu0 0.0
    %324 = vmatpush2.msra.mxu0 0.0
    %325 = vmatprep.subr.mxu0 0.0
    %326 = vmatpush2.msra.mxu0 0.0
    %327 = vmatprep.subr.mxu0 0.0
    %328 = vmatpush2.msra.mxu0 0.0
    %329 = vmatprep.subr.mxu0 0.0
    %330 = vmatpush2.msra.mxu0 0.0
    %331 = vmatprep.subr.mxu0 0.0
    %332 = vmatpush2.msra.mxu0 0.0
    %333 = vmatprep.subr.mxu0 0.0
    %334 = vmatpush2.msra.mxu0 0.0
    %335 = vmatprep.subr.mxu0 0.0
    %336 = vmatpush2.msra.mxu0 0.0
    %337 = vmatprep.subr.mxu0 0.0
    %338 = vmatpush2.msra.mxu0 0.0
    %339 = vmatprep.subr.mxu0 0.0
    %340 = vmatpush2.msra.mxu0 0.0
    %341 = vmatprep.subr.mxu0 0.0
    %342 = vmatpush2.msra.mxu0 0.0
    %343 = vmatprep.subr.mxu0 0.0
    %344 = vmatpush2.msra.mxu0 0.0
    %345 = vmatprep.mubr.f32.mxu0 0.0
    %346 = vmatmul.mubr.f32.gmra.mxu0 %v279
    %v347 = vpop.f32.mrf.mxu0
    %v348 = vadd.f32 %v276, %v347
    %v349 = vpop.f32.mrf.mxu0
    %350 = vdwg.mxu0
    %v351 = vmax.f32 %v348, 0.0
    %v352 = vld [vmem:[%s8] sm:$0xff]
    %v353 = vld [vmem:[%s8 + $0x8] sm:$0xff]
    %v354 = vld [vmem:[%s8 + $0x10] sm:$0xff]
    %v355 = vld [vmem:[%s8 + $0x18] sm:$0xff]
    %v356 = vld [vmem:[%s8 + $0x20] sm:$0xff]
    %v357 = vld [vmem:[%s8 + $0x28] sm:$0xff]
    %v358 = vld [vmem:[%s8 + $0x30] sm:$0xff]
    %v359 = vld [vmem:[%s8 + $0x38] sm:$0xff]
    %v360 = vld [vmem:[%s9] sm:$0x1]
    %v362 = vlaneseq
    %v363 = vshrl.u32 %v362, 7
    %v364 = vsub.s32 0, %v363
    %v365 = vrot.slane %v360, %v364
    %v368 = vsel %vm188, %v351, 0
    %370 = vmatprep.subr.mxu0 0.0
    %371 = vmatpush1.msra.mxu0 0.0
    %372 = vmatprep.subr.mxu0 0.0
    %373 = vmatpush1.msra.mxu0 0.0
    %374 = vmatprep.subr.mxu0 0.0
    %375 = vmatpush1.msra.mxu0 0.0
    %376 = vmatprep.subr.mxu0 0.0
    %377 = vmatpush1.msra.mxu0 0.0
    %378 = vmatprep.subr.mxu0 0.0
    %379 = vmatpush1.msra.mxu0 0.0
    %380 = vmatprep.subr.mxu0 0.0
    %381 = vmatpush1.msra.mxu0 0.0
    %382 = vmatprep.subr.mxu0 0.0
    %383 = vmatpush1.msra.mxu0 0.0
    %384 = vmatprep.subr.mxu0 0.0
    %385 = vmatpush1.msra.mxu0 0.0
    %386 = vmatprep.subr.mxu0 0.0
    %387 = vmatpush1.msra.mxu0 %v359
    %388 = vmatprep.subr.mxu0 0.0
    %389 = vmatpush1.msra.mxu0 %v358
    %390 = vmatprep.subr.mxu0 0.0
    %391 = vmatpush1.msra.mxu0 %v357
    %392 = vmatprep.subr.mxu0 0.0
    %393 = vmatpush1.msra.mxu0 %v356
    %394 = vmatprep.subr.mxu0 0.0
    %395 = vmatpush1.msra.mxu0 %v355
    %396 = vmatprep.subr.mxu0 0.0
    %397 = vmatpush1.msra.mxu0 %v354
    %398 = vmatprep.subr.mxu0 0.0
    %399 = vmatpush1.msra.mxu0 %v353
    %400 = vmatprep.subr.mxu0 0.0
    %401 = vmatpush1.msra.mxu0 %v352
    %402 = vmatprep.subr.mxu0 0.0
    %403 = vmatpush2.msra.mxu0 0.0
    %404 = vmatprep.subr.mxu0 0.0
    %405 = vmatpush2.msra.mxu0 0.0
    %406 = vmatprep.subr.mxu0 0.0
    %407 = vmatpush2.msra.mxu0 0.0
    %408 = vmatprep.subr.mxu0 0.0
    %409 = vmatpush2.msra.mxu0 0.0
    %410 = vmatprep.subr.mxu0 0.0
    %411 = vmatpush2.msra.mxu0 0.0
    %412 = vmatprep.subr.mxu0 0.0
    %413 = vmatpush2.msra.mxu0 0.0
    %414 = vmatprep.subr.mxu0 0.0
    %415 = vmatpush2.msra.mxu0 0.0
    %416 = vmatprep.subr.mxu0 0.0
    %417 = vmatpush2.msra.mxu0 0.0
    %418 = vmatprep.subr.mxu0 0.0
    %419 = vmatpush2.msra.mxu0 0.0
    %420 = vmatprep.subr.mxu0 0.0
    %421 = vmatpush2.msra.mxu0 0.0
    %422 = vmatprep.subr.mxu0 0.0
    %423 = vmatpush2.msra.mxu0 0.0
    %424 = vmatprep.subr.mxu0 0.0
    %425 = vmatpush2.msra.mxu0 0.0
    %426 = vmatprep.subr.mxu0 0.0
    %427 = vmatpush2.msra.mxu0 0.0
    %428 = vmatprep.subr.mxu0 0.0
    %429 = vmatpush2.msra.mxu0 0.0
    %430 = vmatprep.subr.mxu0 0.0
    %431 = vmatpush2.msra.mxu0 0.0
    %432 = vmatprep.subr.mxu0 0.0
    %433 = vmatpush2.msra.mxu0 0.0
    %434 = vmatprep.mubr.f32.mxu0 0.0
    %435 = vmatmul.mubr.f32.gmra.mxu0 %v368
    %v436 = vpop.f32.mrf.mxu0
    %v437 = vadd.f32 %v365, %v436
    %v438 = vpop.f32.mrf.mxu0
    %439 = vdwg.mxu0
    %v440 = vld [vmem:[%s10] sm:$0x1]
    %v442 = vlaneseq
    %v443 = vshrl.u32 %v442, 7
    %v444 = vsub.s32 0, %v443
    %v445 = vrot.slane %v440, %v444
    %v447 = vsub.f32 %v437, %v445
    %v448 = vld [vmem:[%s11] sm:$0x1]
    %v450 = vlaneseq
    %v451 = vshrl.u32 %v450, 7
    %v452 = vsub.s32 0, %v451
    %v453 = vrot.slane %v448, %v452
    %v455 = vmul.f32 %v447, %v453
    %vm456 = vcmask 64512
    %457 = vst.msk [vmem:[#allocation9] sm:$0xff] %vm456, %v437
    %458 = vst.msk [vmem:[#allocation11] sm:$0xff] %vm456, %v455
    %v459 = vld [vmem:[#allocation2] sm:$0xff]
    %v460 = vmul.f32 %v455, %v459
    %v461 = vsel %vm456, %v460, 0.0
    %462 = vadd.xlane.f32.xlu0 %v461
    %v463 = vpop.xlane.xlu0 %462
    %v464 = vmul.f32 %v455, %v455
    %v465 = vsel %vm456, %v464, 0.0
    %466 = vadd.xlane.f32.xlu0 %v465
    %v467 = vpop.xlane.xlu0 %466
    %v468 = vadd.f32 %v467, 1e-12
    %v469 = vrsqrt.pop %v468
    %v470 = vmul.f32 %v463, %v469
    %471 = vst [vmem:[#allocation8] sm:$0xff] %v470
    %s472 = smul.u32 0, 8
    %v473 = vlaneseq
    %v474 = vshrl.u32 %v473, 7
    %v475 = vstv %s472
    %v476 = vadd.s32 %v475, %v474
    %vm477 = vcmp.lt.s32.totalorder %v476, 8
    %v478 = vsel %vm477, 1, 0
    %v479 = vcvt.s32.f32 %v478
    %v480 = vmul.f32 %v455, %v479
    %v481 = vsel %vm456, %v480, 0.0
    %v482 = vrot.slane %v481, 4
    %v483 = vadd.f32 %v481, %v482
    %v484 = vrot.slane %v483, 2
    %v485 = vadd.f32 %v483, %v484
    %v486 = vrot.slane %v485, 1
    %v487 = vadd.f32 %v485, %v486
    %vm488 = vcmask 57344
    %489 = vst.msk [vmem:[#allocation12] sm:$0x1] %vm488, %v487
    %v490 = vmul.f32 %v480, %v480
    %v491 = vsel %vm456, %v490, 0.0
    %v492 = vrot.slane %v491, 4
    %v493 = vadd.f32 %v491, %v492
    %v494 = vrot.slane %v493, 2
    %v495 = vadd.f32 %v493, %v494
    %v496 = vrot.slane %v495, 1
    %v497 = vadd.f32 %v495, %v496
    %498 = vst.msk [vmem:[#allocation14] sm:$0x1] %vm488, %v497
    // Predicated region
    $region62: #{tpu_custom_call.1} parent=1 // pred_check
      _
    $region63: #{tpu_custom_call.1} parent=1 // pred_check_branch
      %500 = sbr.rel (0) target = $region65
    $region64: #{tpu_custom_call.1} parent=1 // pred_region
      %s502 = ssub.s32 128, 128
      %503 = vsyncadd [#allocation4], %s502
      %s505 = sshll.u32 [#allocation8], 4
      %s506 = int_to_ptr.vmem [resolvable:$true] %s505
      %508 = dma.vmem_to_hbm [thread:$0]  %s506, 128, %s12, [#allocation4]
    $region65: #{tpu_custom_call.1} parent=1 // pred_fallthru
      _
    // Predicated region
    $region66: #{tpu_custom_call.1} parent=1 // pred_check
      _
    $region67: #{tpu_custom_call.1} parent=1 // pred_check_branch
      %510 = sbr.rel (0) target = $region69
    $region68: #{tpu_custom_call.1} parent=1 // pred_region
      %s512 = ssub.s32 128, 128
      %513 = vsyncadd [#allocation10], %s512
      %s515 = sshll.u32 [#allocation9], 4
      %s516 = int_to_ptr.vmem [resolvable:$true] %s515
      %518 = dma.vmem_to_hbm [thread:$0]  %s516, 128, %s13, [#allocation10]
    $region69: #{tpu_custom_call.1} parent=1 // pred_fallthru
      _
    // Predicated region
    $region70: #{tpu_custom_call.1} parent=1 // pred_check
      _
    $region71: #{tpu_custom_call.1} parent=1 // pred_check_branch
      %520 = sbr.rel (0) target = $region73
    $region72: #{tpu_custom_call.1} parent=1 // pred_region
      %s522 = ssub.s32 128, 128
      %523 = vsyncadd [#allocation10], %s522
      %s525 = sshll.u32 [#allocation11], 4
      %s526 = int_to_ptr.vmem [resolvable:$true] %s525
      %528 = dma.vmem_to_hbm [thread:$0]  %s526, 128, %s14, [#allocation10]
    $region73: #{tpu_custom_call.1} parent=1 // pred_fallthru
      _
    // Predicated region
    $region74: #{tpu_custom_call.1} parent=1 // pred_check
      _
    $region75: #{tpu_custom_call.1} parent=1 // pred_check_branch
      %530 = sbr.rel (0) target = $region77
    $region76: #{tpu_custom_call.1} parent=1 // pred_region
      %s532 = ssub.s32 16, 16
      %533 = vsyncadd [#allocation13], %s532
      %s535 = sshll.u32 [#allocation12], 4
      %s536 = int_to_ptr.vmem [resolvable:$true] %s535
      %538 = dma.vmem_to_hbm [thread:$0]  %s536, 16, %s15, [#allocation13]
    $region77: #{tpu_custom_call.1} parent=1 // pred_fallthru
      _
    // Predicated region
    $region78: #{tpu_custom_call.1} parent=1 // pred_check
      _
    $region79: #{tpu_custom_call.1} parent=1 // pred_check_branch
      %540 = sbr.rel (0) target = $region81
    $region80: #{tpu_custom_call.1} parent=1 // pred_region
      %s542 = ssub.s32 16, 16
      %543 = vsyncadd [#allocation13], %s542
      %s545 = sshll.u32 [#allocation14], 4
      %s546 = int_to_ptr.vmem [resolvable:$true] %s545
      %548 = dma.vmem_to_hbm [thread:$0]  %s546, 16, %s16, [#allocation13]
    $region81: #{tpu_custom_call.1} parent=1 // pred_fallthru
      _
    // Predicated region
    $region82: #{tpu_custom_call.1} parent=1 // pred_check
      _
    $region83: #{tpu_custom_call.1} parent=1 // pred_check_branch
      %550 = sbr.rel (0) target = $region85
    $region84: #{tpu_custom_call.1} parent=1 // pred_region
      %551 = dma.done [#allocation4], 128
    $region85: #{tpu_custom_call.1} parent=1 // pred_fallthru
      _
    // Predicated region
    $region86: #{tpu_custom_call.1} parent=1 // pred_check
      _
    $region87: #{tpu_custom_call.1} parent=1 // pred_check_branch
      %553 = sbr.rel (0) target = $region89
    $region88: #{tpu_custom_call.1} parent=1 // pred_region
      %554 = dma.done [#allocation10], 128
    $region89: #{tpu_custom_call.1} parent=1 // pred_fallthru
      _
    // Predicated region
    $region90: #{tpu_custom_call.1} parent=1 // pred_check
      _
    $region91: #{tpu_custom_call.1} parent=1 // pred_check_branch
      %556 = sbr.rel (0) target = $region93
    $region92: #{tpu_custom_call.1} parent=1 // pred_region
      %557 = dma.done [#allocation10], 128
    $region93: #{tpu_custom_call.1} parent=1 // pred_fallthru
      _
    // Predicated region
    $region94: #{tpu_custom_call.1} parent=1 // pred_check
      _
    $region95: #{tpu_custom_call.1} parent=1 // pred_check_branch
      %559 = sbr.rel (0) target = $region97
    $region96: #{tpu_custom_call.1} parent=1 // pred_region
      %560 = dma.done [#allocation13], 16
    $region97: #{tpu_custom_call.1} parent=1 // pred_fallthru
      _
    // Predicated region
    $region98: #{tpu_custom_call.1} parent=1 // pred_check
      _
    $region99: #{tpu_custom_call.1} parent=1 // pred_check_branch
      %562 = sbr.rel (0) target = $region101
    $region100: #{tpu_custom_call.1} parent=1 // pred_region
      %563 = dma.done [#allocation13], 16
    $region101: #{tpu_custom_call.1} parent=1 // pred_fallthru
      _
    %564 = vsyncpa [#allocation3], 1
    %565 = vsyncpa [#allocation6], 1
    %566 = vsyncpa [#allocation4], 1
    %567 = vsyncpa [#allocation10], 1
    %568 = vsyncpa [#allocation13], 1

</llo_original>
